<compile_context>
chip_gen: v7x
topology: tpu7x:2x2x1
jax: 0.10.0
libtpu: 0.0.40
codegen_flags: <defaults>
</compile_context>

<pallas_src>
import functools

import jax
import jax.numpy as jnp
from jax.experimental import pallas as pl
from jax.experimental.pallas import tpu as pltpu


def _triplet_kernel(emb_i_ref, emb_j_ref, loss_ref, *, temperature, margin):
    inv_t = 1.0 / temperature

    def _row_normalize(x):
        # F.normalize(x, dim=1): x / max(||x||_2, eps), eps = 1e-12
        nrm = jnp.sqrt(jnp.sum(x * x, axis=1, keepdims=True))
        return x / jnp.maximum(nrm, 1e-12)

    z_i = _row_normalize(emb_i_ref[...].astype(jnp.float32))    # (B, D)
    z_j = _row_normalize(emb_j_ref[...].astype(jnp.float32))    # (B, D)
    B = z_i.shape[0]

    # Row-wise dots (VPU work, no masks / diagonals extracted):
    #   pos[k]    = sim[k, k+B] = sim[k+B, k] = <z_i[k], z_j[k]>
    #   self_*[k] = sim[k, k]   (resp. sim[k+B, k+B]) ~= 1 after normalization
    pos = jnp.sum(z_i * z_j, axis=1, keepdims=True)             # (B, 1)
    self_i = jnp.sum(z_i * z_i, axis=1, keepdims=True)          # (B, 1)
    self_j = jnp.sum(z_j * z_j, axis=1, keepdims=True)          # (B, 1)

    def dn(a, b):
        # a @ b.T — NT matmul, no explicit transpose materialized.
        return jax.lax.dot_general(
            a, b, dimension_numbers=(((1,), (1,)), ((), ())),
            preferred_element_type=jnp.float32)

    # sim = [[A, M], [M^T, C]] — blocks formed directly, never concatenated.
    A = dn(z_i, z_i)                                            # (B, B)
    M = dn(z_i, z_j)                                            # (B, B)
    Mt = dn(z_j, z_i)                                           # (B, B)
    C = dn(z_j, z_j)                                            # (B, B)

    # Full row-sums of exp(sim / t) for the top and bottom halves.
    row_top = (jnp.sum(jnp.exp(A * inv_t), axis=1, keepdims=True) +
               jnp.sum(jnp.exp(M * inv_t), axis=1, keepdims=True))   # (B, 1)
    row_bot = (jnp.sum(jnp.exp(Mt * inv_t), axis=1, keepdims=True) +
               jnp.sum(jnp.exp(C * inv_t), axis=1, keepdims=True))   # (B, 1)

    # negatives_mask (tiled ~eye(B)) zeroes, in every row, exactly the
    # self-similarity and the positive-pair entry -> subtract those terms.
    exp_pos = jnp.exp(pos * inv_t)                              # (B, 1)
    denom_top = row_top - jnp.exp(self_i * inv_t) - exp_pos
    denom_bot = row_bot - jnp.exp(self_j * inv_t) - exp_pos

    new_pos = jnp.log(1.0 + exp_pos)                            # shared by both halves
    hinge_top = jnp.maximum(0.0, jnp.log(1.0 + denom_top) - new_pos + margin)
    hinge_bot = jnp.maximum(0.0, jnp.log(1.0 + denom_bot) - new_pos + margin)

    loss_ref[0, 0] = (jnp.sum(hinge_top) + jnp.sum(hinge_bot)) / (2.0 * B)


def triplet_similarity(emb_i, emb_j, *, temperature=0.5, margin=0.1):
    B, D = emb_i.shape
    assert emb_j.shape == (B, D)

    kernel = functools.partial(
        _triplet_kernel,
        temperature=float(temperature),
        margin=float(margin),
    )

    out = pl.pallas_call(
        kernel,
        out_shape=jax.ShapeDtypeStruct((1, 1), jnp.float32),
        in_specs=[
            pl.BlockSpec(memory_space=pltpu.MemorySpace.VMEM),
            pl.BlockSpec(memory_space=pltpu.MemorySpace.VMEM),
        ],
        out_specs=pl.BlockSpec(memory_space=pltpu.MemorySpace.SMEM),
    )(emb_i, emb_j)  # native dtype in; upcast happens inside the kernel
    return out[0, 0]


def _reference(emb_i, emb_j, temperature=0.5, margin=0.1):
    # Pure-JAX reference mirroring the PyTorch module exactly.
    def norm(x):
        n = jnp.linalg.norm(x, axis=1, keepdims=True)
        return x / jnp.maximum(n, 1e-12)

    B = emb_i.shape[0]
    reps = jnp.concatenate([norm(emb_i), norm(emb_j)], axis=0)
    sim = reps @ reps.T
    sim_ij = jnp.diagonal(sim, offset=B)
    sim_ji = jnp.diagonal(sim, offset=-B)
    positives = jnp.concatenate([sim_ij, sim_ji], axis=0)
    new_pos = jnp.log(1 + jnp.exp(positives / temperature))
    base_mask = (~jnp.eye(B, dtype=bool)).astype(jnp.float32)
    mask = jnp.tile(base_mask, (2, 2))
    denom = jnp.sum(mask * jnp.exp(sim / temperature), axis=1)
    new_neg = jnp.log(1 + denom)
    lp = jnp.maximum(0.0, new_neg - new_pos + margin)
    return jnp.sum(lp) / (2 * B)


if __name__ == "__main__":
    key = jax.random.PRNGKey(0)
    k1, k2 = jax.random.split(key)

    batch_size = 8
    hidden = 32

    emb_i = jax.random.normal(k1, (batch_size, hidden), dtype=jnp.float32)
    emb_j = jax.random.normal(k2, (batch_size, hidden), dtype=jnp.float32)

    loss = triplet_similarity(emb_i, emb_j, temperature=0.5, margin=0.1)
    jax.block_until_ready(loss)

    ref = _reference(emb_i, emb_j, temperature=0.5, margin=0.1)
    assert jnp.allclose(loss, ref, atol=1e-4, rtol=1e-4), (loss, ref)

    print("KERNEL_OK")
</pallas_src>

<mosaic_0001>
module attributes {stable_mosaic.version = 11 : i64} {
  func.func @_triplet_kernel(%arg0: memref<8x32xf32, #tpu.memory_space<vmem>>, %arg1: memref<8x32xf32, #tpu.memory_space<vmem>>, %arg2: memref<1x1xf32, #tpu.memory_space<smem>>) attributes {dimension_semantics = [], scalar_prefetch = 0 : i64, scratch_operands = 0 : i64, tpu.core_type = #tpu.core_type<tc>} {
    %c0 = arith.constant 0 : index
    %c0_0 = arith.constant 0 : index
    %0 = vector.load %arg0[%c0, %c0_0] : memref<8x32xf32, #tpu.memory_space<vmem>>, vector<8x32xf32>
    %1 = arith.mulf %0, %0 : vector<8x32xf32>
    %cst = arith.constant dense<0.000000e+00> : vector<8xf32>
    %2 = vector.multi_reduction <add>, %1, %cst [1] : vector<8x32xf32> to vector<8xf32>
    %3 = vector.shape_cast %2 : vector<8xf32> to vector<8x1xf32>
    %4 = math.sqrt %3 : vector<8x1xf32>
    %cst_1 = arith.constant 9.99999996E-13 : f32
    %5 = vector.broadcast %cst_1 : f32 to vector<8x1xf32>
    %6 = arith.maximumf %4, %5 : vector<8x1xf32>
    %7 = vector.broadcast %6 : vector<8x1xf32> to vector<8x32xf32>
    %8 = arith.divf %0, %7 : vector<8x32xf32>
    %c0_2 = arith.constant 0 : index
    %c0_3 = arith.constant 0 : index
    %9 = vector.load %arg1[%c0_2, %c0_3] : memref<8x32xf32, #tpu.memory_space<vmem>>, vector<8x32xf32>
    %10 = arith.mulf %9, %9 : vector<8x32xf32>
    %cst_4 = arith.constant dense<0.000000e+00> : vector<8xf32>
    %11 = vector.multi_reduction <add>, %10, %cst_4 [1] : vector<8x32xf32> to vector<8xf32>
    %12 = vector.shape_cast %11 : vector<8xf32> to vector<8x1xf32>
    %13 = math.sqrt %12 : vector<8x1xf32>
    %cst_5 = arith.constant 9.99999996E-13 : f32
    %14 = vector.broadcast %cst_5 : f32 to vector<8x1xf32>
    %15 = arith.maximumf %13, %14 : vector<8x1xf32>
    %16 = vector.broadcast %15 : vector<8x1xf32> to vector<8x32xf32>
    %17 = arith.divf %9, %16 : vector<8x32xf32>
    %18 = arith.mulf %8, %17 : vector<8x32xf32>
    %cst_6 = arith.constant dense<0.000000e+00> : vector<8xf32>
    %19 = vector.multi_reduction <add>, %18, %cst_6 [1] : vector<8x32xf32> to vector<8xf32>
    %20 = vector.shape_cast %19 : vector<8xf32> to vector<8x1xf32>
    %21 = arith.mulf %8, %8 : vector<8x32xf32>
    %cst_7 = arith.constant dense<0.000000e+00> : vector<8xf32>
    %22 = vector.multi_reduction <add>, %21, %cst_7 [1] : vector<8x32xf32> to vector<8xf32>
    %23 = vector.shape_cast %22 : vector<8xf32> to vector<8x1xf32>
    %24 = arith.mulf %17, %17 : vector<8x32xf32>
    %cst_8 = arith.constant dense<0.000000e+00> : vector<8xf32>
    %25 = vector.multi_reduction <add>, %24, %cst_8 [1] : vector<8x32xf32> to vector<8xf32>
    %26 = vector.shape_cast %25 : vector<8xf32> to vector<8x1xf32>
    %cst_9 = arith.constant dense<0.000000e+00> : vector<8x8xf32>
    %27 = tpu.matmul %8, %8, %cst_9 {dimension_numbers = #tpu.dot_dimension_numbers<[1], [1], [0], [0], [0, 0, 1, 0], [], []>} : vector<8x32xf32>, vector<8x32xf32>, vector<8x8xf32> -> vector<8x8xf32>
    %cst_10 = arith.constant dense<0.000000e+00> : vector<8x8xf32>
    %28 = tpu.matmul %8, %17, %cst_10 {dimension_numbers = #tpu.dot_dimension_numbers<[1], [1], [0], [0], [0, 0, 1, 0], [], []>} : vector<8x32xf32>, vector<8x32xf32>, vector<8x8xf32> -> vector<8x8xf32>
    %cst_11 = arith.constant dense<0.000000e+00> : vector<8x8xf32>
    %29 = tpu.matmul %17, %8, %cst_11 {dimension_numbers = #tpu.dot_dimension_numbers<[1], [1], [0], [0], [0, 0, 1, 0], [], []>} : vector<8x32xf32>, vector<8x32xf32>, vector<8x8xf32> -> vector<8x8xf32>
    %cst_12 = arith.constant dense<0.000000e+00> : vector<8x8xf32>
    %30 = tpu.matmul %17, %17, %cst_12 {dimension_numbers = #tpu.dot_dimension_numbers<[1], [1], [0], [0], [0, 0, 1, 0], [], []>} : vector<8x32xf32>, vector<8x32xf32>, vector<8x8xf32> -> vector<8x8xf32>
    %cst_13 = arith.constant 2.000000e+00 : f32
    %31 = vector.broadcast %cst_13 : f32 to vector<8x8xf32>
    %32 = arith.mulf %27, %31 : vector<8x8xf32>
    %33 = math.exp %32 : vector<8x8xf32>
    %cst_14 = arith.constant dense<0.000000e+00> : vector<8xf32>
    %34 = vector.multi_reduction <add>, %33, %cst_14 [1] : vector<8x8xf32> to vector<8xf32>
    %35 = vector.shape_cast %34 : vector<8xf32> to vector<8x1xf32>
    %cst_15 = arith.constant 2.000000e+00 : f32
    %36 = vector.broadcast %cst_15 : f32 to vector<8x8xf32>
    %37 = arith.mulf %28, %36 : vector<8x8xf32>
    %38 = math.exp %37 : vector<8x8xf32>
    %cst_16 = arith.constant dense<0.000000e+00> : vector<8xf32>
    %39 = vector.multi_reduction <add>, %38, %cst_16 [1] : vector<8x8xf32> to vector<8xf32>
    %40 = vector.shape_cast %39 : vector<8xf32> to vector<8x1xf32>
    %41 = arith.addf %35, %40 : vector<8x1xf32>
    %cst_17 = arith.constant 2.000000e+00 : f32
    %42 = vector.broadcast %cst_17 : f32 to vector<8x8xf32>
    %43 = arith.mulf %29, %42 : vector<8x8xf32>
    %44 = math.exp %43 : vector<8x8xf32>
    %cst_18 = arith.constant dense<0.000000e+00> : vector<8xf32>
    %45 = vector.multi_reduction <add>, %44, %cst_18 [1] : vector<8x8xf32> to vector<8xf32>
    %46 = vector.shape_cast %45 : vector<8xf32> to vector<8x1xf32>
    %cst_19 = arith.constant 2.000000e+00 : f32
    %47 = vector.broadcast %cst_19 : f32 to vector<8x8xf32>
    %48 = arith.mulf %30, %47 : vector<8x8xf32>
    %49 = math.exp %48 : vector<8x8xf32>
    %cst_20 = arith.constant dense<0.000000e+00> : vector<8xf32>
    %50 = vector.multi_reduction <add>, %49, %cst_20 [1] : vector<8x8xf32> to vector<8xf32>
    %51 = vector.shape_cast %50 : vector<8xf32> to vector<8x1xf32>
    %52 = arith.addf %46, %51 : vector<8x1xf32>
    %cst_21 = arith.constant 2.000000e+00 : f32
    %53 = vector.broadcast %cst_21 : f32 to vector<8x1xf32>
    %54 = arith.mulf %20, %53 : vector<8x1xf32>
    %55 = math.exp %54 : vector<8x1xf32>
    %cst_22 = arith.constant 2.000000e+00 : f32
    %56 = vector.broadcast %cst_22 : f32 to vector<8x1xf32>
    %57 = arith.mulf %23, %56 : vector<8x1xf32>
    %58 = math.exp %57 : vector<8x1xf32>
    %59 = arith.subf %41, %58 : vector<8x1xf32>
    %60 = arith.subf %59, %55 : vector<8x1xf32>
    %cst_23 = arith.constant 2.000000e+00 : f32
    %61 = vector.broadcast %cst_23 : f32 to vector<8x1xf32>
    %62 = arith.mulf %26, %61 : vector<8x1xf32>
    %63 = math.exp %62 : vector<8x1xf32>
    %64 = arith.subf %52, %63 : vector<8x1xf32>
    %65 = arith.subf %64, %55 : vector<8x1xf32>
    %cst_24 = arith.constant 1.000000e+00 : f32
    %66 = vector.broadcast %cst_24 : f32 to vector<8x1xf32>
    %67 = arith.addf %66, %55 : vector<8x1xf32>
    %68 = math.log %67 : vector<8x1xf32>
    %cst_25 = arith.constant 1.000000e+00 : f32
    %69 = vector.broadcast %cst_25 : f32 to vector<8x1xf32>
    %70 = arith.addf %69, %60 : vector<8x1xf32>
    %71 = math.log %70 : vector<8x1xf32>
    %72 = arith.subf %71, %68 : vector<8x1xf32>
    %cst_26 = arith.constant 1.000000e-01 : f32
    %73 = vector.broadcast %cst_26 : f32 to vector<8x1xf32>
    %74 = arith.addf %72, %73 : vector<8x1xf32>
    %cst_27 = arith.constant 0.000000e+00 : f32
    %75 = vector.broadcast %cst_27 : f32 to vector<8x1xf32>
    %76 = arith.maximumf %75, %74 : vector<8x1xf32>
    %cst_28 = arith.constant 1.000000e+00 : f32
    %77 = vector.broadcast %cst_28 : f32 to vector<8x1xf32>
    %78 = arith.addf %77, %65 : vector<8x1xf32>
    %79 = math.log %78 : vector<8x1xf32>
    %80 = arith.subf %79, %68 : vector<8x1xf32>
    %cst_29 = arith.constant 1.000000e-01 : f32
    %81 = vector.broadcast %cst_29 : f32 to vector<8x1xf32>
    %82 = arith.addf %80, %81 : vector<8x1xf32>
    %cst_30 = arith.constant 0.000000e+00 : f32
    %83 = vector.broadcast %cst_30 : f32 to vector<8x1xf32>
    %84 = arith.maximumf %83, %82 : vector<8x1xf32>
    %85 = vector.shape_cast %76 : vector<8x1xf32> to vector<1x8x1xf32>
    %cst_31 = arith.constant dense<0.000000e+00> : vector<1xf32>
    %86 = vector.multi_reduction <add>, %85, %cst_31 [1, 2] : vector<1x8x1xf32> to vector<1xf32>
    %87 = vector.shape_cast %86 : vector<1xf32> to vector<1x1x1xf32>
    %88 = vector.extract %87[0, 0, 0] : f32 from vector<1x1x1xf32>
    %89 = vector.shape_cast %84 : vector<8x1xf32> to vector<1x8x1xf32>
    %cst_32 = arith.constant dense<0.000000e+00> : vector<1xf32>
    %90 = vector.multi_reduction <add>, %89, %cst_32 [1, 2] : vector<1x8x1xf32> to vector<1xf32>
    %91 = vector.shape_cast %90 : vector<1xf32> to vector<1x1x1xf32>
    %92 = vector.extract %91[0, 0, 0] : f32 from vector<1x1x1xf32>
    %93 = arith.addf %88, %92 : f32
    %cst_33 = arith.constant 1.600000e+01 : f32
    %94 = arith.divf %93, %cst_33 : f32
    %c0_34 = arith.constant 0 : index
    %c0_35 = arith.constant 0 : index
    %95 = memref.load %arg2[%c0_34, %c0_35] : memref<1x1xf32, #tpu.memory_space<smem>>
    memref.store %94, %arg2[%c0_34, %c0_35] : memref<1x1xf32, #tpu.memory_space<smem>>
    return
  }
}

</mosaic_0001>

<llo_original>
// kernel: tpu_custom_call.1
$region0: #{tpu_custom_call.1}
  #allocation0 [shape = 'u32[]', space=smem, size = 0x4, offset = 0x4, fixed_abs, tag = 'smem constant byte address 0x4 - core index']
  #allocation1 [shape = 'u32[144,128]{1,0:T(1,128)}', space=vmem, size = 0x12000, scoped, tag = 'internal scratch']
  %s0 = inlined_call_operand.hbm [shape: f32[8,32], index: 0, kind: input, shape index: {}]
  %s1 = inlined_call_operand.hbm [shape: f32[8,32], index: 1, kind: input, shape index: {}]
  %s2 = inlined_call_operand.hbm [shape: f32[1,1], index: 2, kind: output, shape index: {}]
  %s3 = sld [smem:[#allocation0]]
  $region26: #{tpu_custom_call.1} parent=0
    _
  %s5 = ssub.s32 1, %s3
  %s6 = scalar_select 0, %s5, %s3
  $region1: #{tpu_custom_call.1} parent=0
    #allocation2 [shape = 'u8[4096]{0}', space=vmem, size = 0x1000, scoped, tag = 'input window, operand 0, single buffered']
    #allocation3 [shape = 's32[1]{0}', space=sflag, size = 0x4, scoped, tag = 'scoped memory for tpu_custom_call.1']
    #allocation4 [shape = 's32[1]{0}', space=sflag, size = 0x4, scoped, tag = 'scoped memory for tpu_custom_call.1']
    #allocation5 [shape = 'u8[4096]{0}', space=vmem, size = 0x1000, scoped, tag = 'input window, operand 1, single buffered']
    #allocation6 [shape = 's32[1]{0}', space=sflag, size = 0x4, scoped, tag = 'scoped memory for tpu_custom_call.1']
    #allocation7 [shape = 'u8[512]{0}', space=smem, size = 0x200, scoped, tag = 'output window, operand 0, single buffered']
    %7 = vsyncpa [#allocation3], 0
    %8 = vsyncpa [#allocation6], 0
    %9 = vsyncpa [#allocation4], 0
    // Predicated region
    $region2: #{tpu_custom_call.1} parent=1 // pred_check
      _
    $region3: #{tpu_custom_call.1} parent=1 // pred_check_branch
      %11 = sbr.rel (0) target = $region5
    $region4: #{tpu_custom_call.1} parent=1 // pred_region
      %s13 = ssub.s32 128, 128
      %14 = vsyncadd [#allocation3], %s13
      %s16 = sshll.u32 [#allocation2], 4
      %s17 = int_to_ptr.vmem [resolvable:$true] %s16
      %19 = dma.hbm_to_vmem [thread:$0]  %s0, 128, %s17, [#allocation3]
    $region5: #{tpu_custom_call.1} parent=1 // pred_fallthru
      _
    // Predicated region
    $region6: #{tpu_custom_call.1} parent=1 // pred_check
      _
    $region7: #{tpu_custom_call.1} parent=1 // pred_check_branch
      %21 = sbr.rel (0) target = $region9
    $region8: #{tpu_custom_call.1} parent=1 // pred_region
      %s23 = ssub.s32 128, 128
      %24 = vsyncadd [#allocation6], %s23
      %s26 = sshll.u32 [#allocation5], 4
      %s27 = int_to_ptr.vmem [resolvable:$true] %s26
      %29 = dma.hbm_to_vmem [thread:$0]  %s1, 128, %s27, [#allocation6]
    $region9: #{tpu_custom_call.1} parent=1 // pred_fallthru
      _
    // Predicated region
    $region10: #{tpu_custom_call.1} parent=1 // pred_check
      _
    $region11: #{tpu_custom_call.1} parent=1 // pred_check_branch
      %31 = sbr.rel (0) target = $region13
    $region12: #{tpu_custom_call.1} parent=1 // pred_region
      %32 = dma.done [#allocation3], 128
    $region13: #{tpu_custom_call.1} parent=1 // pred_fallthru
      _
    // Predicated region
    $region14: #{tpu_custom_call.1} parent=1 // pred_check
      _
    $region15: #{tpu_custom_call.1} parent=1 // pred_check_branch
      %34 = sbr.rel (0) target = $region17
    $region16: #{tpu_custom_call.1} parent=1 // pred_region
      %35 = dma.done [#allocation6], 128
    $region17: #{tpu_custom_call.1} parent=1 // pred_fallthru
      _
    %v36 = vld [vmem:[#allocation2] sm:$0xff]
    %v37 = vmul.f32 %v36, %v36
    %vm38 = vcmask 261120
    %v39 = vsel %vm38, %v37, 0.0
    %40 = vadd.xlane.f32.xlu0 %v39
    %v41 = vpop.xlane.xlu0 %40
    %v42 = vrsqrt.pop %v41
    %v43 = vmul.f32 %v41, %v42
    %vm44 = vcmp.eq.f32.partialorder %v41, inf
    %v45 = vsel %vm44, %v41, %v43
    %vm46 = vcmp.eq.f32.partialorder %v41, 0.0
    %v47 = vand.u32 %v41, 2147483648
    %v48 = vsel %vm46, %v47, %v45
    %v49 = vmax.f32 %v48, 1e-12
    %v50 = vrcp.pop %v49
    %v51 = vmul.f32 %v36, %v50
    %v52 = vld [vmem:[#allocation5] sm:$0xff]
    %v53 = vmul.f32 %v52, %v52
    %v54 = vsel %vm38, %v53, 0.0
    %55 = vadd.xlane.f32.xlu0 %v54
    %v56 = vpop.xlane.xlu0 %55
    %v57 = vrsqrt.pop %v56
    %v58 = vmul.f32 %v56, %v57
    %vm59 = vcmp.eq.f32.partialorder %v56, inf
    %v60 = vsel %vm59, %v56, %v58
    %vm61 = vcmp.eq.f32.partialorder %v56, 0.0
    %v62 = vand.u32 %v56, 2147483648
    %v63 = vsel %vm61, %v62, %v60
    %v64 = vmax.f32 %v63, 1e-12
    %v65 = vrcp.pop %v64
    %v66 = vmul.f32 %v52, %v65
    %v67 = vmul.f32 %v51, %v66
    %v68 = vsel %vm38, %v67, 0.0
    %69 = vadd.xlane.f32.xlu0 %v68
    %v70 = vpop.xlane.xlu0 %69
    %v71 = vmul.f32 %v51, %v51
    %v72 = vsel %vm38, %v71, 0.0
    %73 = vadd.xlane.f32.xlu0 %v72
    %v74 = vpop.xlane.xlu0 %73
    %v75 = vmul.f32 %v66, %v66
    %v76 = vsel %vm38, %v75, 0.0
    %77 = vadd.xlane.f32.xlu0 %v76
    %v78 = vpop.xlane.xlu0 %77
    %v80 = vsel %vm38, %v51, 0
    %82 = vmatprep.subr.mxu0 0.0
    %83 = vmatpush1.xpose.msra.mxu0 %v80
    %84 = vmatprep.subr.mxu0 0.0
    %85 = vmatpush1.xpose.msra.mxu0 0.0
    %86 = vmatprep.subr.mxu0 0.0
    %87 = vmatpush1.xpose.msra.mxu0 0.0
    %88 = vmatprep.subr.mxu0 0.0
    %89 = vmatpush1.xpose.msra.mxu0 0.0
    %90 = vmatprep.subr.mxu0 0.0
    %91 = vmatpush1.xpose.msra.mxu0 0.0
    %92 = vmatprep.subr.mxu0 0.0
    %93 = vmatpush1.xpose.msra.mxu0 0.0
    %94 = vmatprep.subr.mxu0 0.0
    %95 = vmatpush1.xpose.msra.mxu0 0.0
    %96 = vmatprep.subr.mxu0 0.0
    %97 = vmatpush1.xpose.msra.mxu0 0.0
    %98 = vmatprep.subr.mxu0 0.0
    %99 = vmatpush1.xpose.msra.mxu0 0.0
    %100 = vmatprep.subr.mxu0 0.0
    %101 = vmatpush1.xpose.msra.mxu0 0.0
    %102 = vmatprep.subr.mxu0 0.0
    %103 = vmatpush1.xpose.msra.mxu0 0.0
    %104 = vmatprep.subr.mxu0 0.0
    %105 = vmatpush1.xpose.msra.mxu0 0.0
    %106 = vmatprep.subr.mxu0 0.0
    %107 = vmatpush1.xpose.msra.mxu0 0.0
    %108 = vmatprep.subr.mxu0 0.0
    %109 = vmatpush1.xpose.msra.mxu0 0.0
    %110 = vmatprep.subr.mxu0 0.0
    %111 = vmatpush1.xpose.msra.mxu0 0.0
    %112 = vmatprep.subr.mxu0 0.0
    %113 = vmatpush1.xpose.msra.mxu0 0.0
    %114 = vmatprep.subr.mxu0 0.0
    %115 = vmatpush1.xpose.msra.mxu0 0.0
    %116 = vmatprep.subr.mxu0 0.0
    %117 = vmatpush1.xpose.msra.mxu0 0.0
    %118 = vmatprep.subr.mxu0 0.0
    %119 = vmatpush1.xpose.msra.mxu0 0.0
    %120 = vmatprep.subr.mxu0 0.0
    %121 = vmatpush1.xpose.msra.mxu0 0.0
    %122 = vmatprep.subr.mxu0 0.0
    %123 = vmatpush1.xpose.msra.mxu0 0.0
    %124 = vmatprep.subr.mxu0 0.0
    %125 = vmatpush1.xpose.msra.mxu0 0.0
    %126 = vmatprep.subr.mxu0 0.0
    %127 = vmatpush1.xpose.msra.mxu0 0.0
    %128 = vmatprep.subr.mxu0 0.0
    %129 = vmatpush1.xpose.msra.mxu0 0.0
    %130 = vmatprep.subr.mxu0 0.0
    %131 = vmatpush1.xpose.msra.mxu0 0.0
    %132 = vmatprep.subr.mxu0 0.0
    %133 = vmatpush1.xpose.msra.mxu0 0.0
    %134 = vmatprep.subr.mxu0 0.0
    %135 = vmatpush1.xpose.msra.mxu0 0.0
    %136 = vmatprep.subr.mxu0 0.0
    %137 = vmatpush1.xpose.msra.mxu0 0.0
    %138 = vmatprep.subr.mxu0 0.0
    %139 = vmatpush1.xpose.msra.mxu0 0.0
    %140 = vmatprep.subr.mxu0 0.0
    %141 = vmatpush1.xpose.msra.mxu0 0.0
    %142 = vmatprep.subr.mxu0 0.0
    %143 = vmatpush1.xpose.msra.mxu0 0.0
    %144 = vmatprep.subr.mxu0 0.0
    %145 = vmatpush1.xpose.msra.mxu0 0.0
    %146 = vmatprep.mubr.f32.mxu0 0.0
    %147 = vmatmul.mubr.f32.gmra.mrb[0].mxu0 %v80
    %v148 = vpop.f32.mrb[0].mxu0
    %v149 = vadd.f32 0.0, %v148
    %v150 = vpop.f32.mrb[0].mxu0
    %151 = vdwg.mxu0
    %v153 = vsel %vm38, %v66, 0
    %155 = vmatprep.subr.mxu0 0.0
    %156 = vmatpush1.xpose.msra.mxu0 %v153
    %157 = vmatprep.subr.mxu0 0.0
    %158 = vmatpush1.xpose.msra.mxu0 0.0
    %159 = vmatprep.subr.mxu0 0.0
    %160 = vmatpush1.xpose.msra.mxu0 0.0
    %161 = vmatprep.subr.mxu0 0.0
    %162 = vmatpush1.xpose.msra.mxu0 0.0
    %163 = vmatprep.subr.mxu0 0.0
    %164 = vmatpush1.xpose.msra.mxu0 0.0
    %165 = vmatprep.subr.mxu0 0.0
    %166 = vmatpush1.xpose.msra.mxu0 0.0
    %167 = vmatprep.subr.mxu0 0.0
    %168 = vmatpush1.xpose.msra.mxu0 0.0
    %169 = vmatprep.subr.mxu0 0.0
    %170 = vmatpush1.xpose.msra.mxu0 0.0
    %171 = vmatprep.subr.mxu0 0.0
    %172 = vmatpush1.xpose.msra.mxu0 0.0
    %173 = vmatprep.subr.mxu0 0.0
    %174 = vmatpush1.xpose.msra.mxu0 0.0
    %175 = vmatprep.subr.mxu0 0.0
    %176 = vmatpush1.xpose.msra.mxu0 0.0
    %177 = vmatprep.subr.mxu0 0.0
    %178 = vmatpush1.xpose.msra.mxu0 0.0
    %179 = vmatprep.subr.mxu0 0.0
    %180 = vmatpush1.xpose.msra.mxu0 0.0
    %181 = vmatprep.subr.mxu0 0.0
    %182 = vmatpush1.xpose.msra.mxu0 0.0
    %183 = vmatprep.subr.mxu0 0.0
    %184 = vmatpush1.xpose.msra.mxu0 0.0
    %185 = vmatprep.subr.mxu0 0.0
    %186 = vmatpush1.xpose.msra.mxu0 0.0
    %187 = vmatprep.subr.mxu0 0.0
    %188 = vmatpush1.xpose.msra.mxu0 0.0
    %189 = vmatprep.subr.mxu0 0.0
    %190 = vmatpush1.xpose.msra.mxu0 0.0
    %191 = vmatprep.subr.mxu0 0.0
    %192 = vmatpush1.xpose.msra.mxu0 0.0
    %193 = vmatprep.subr.mxu0 0.0
    %194 = vmatpush1.xpose.msra.mxu0 0.0
    %195 = vmatprep.subr.mxu0 0.0
    %196 = vmatpush1.xpose.msra.mxu0 0.0
    %197 = vmatprep.subr.mxu0 0.0
    %198 = vmatpush1.xpose.msra.mxu0 0.0
    %199 = vmatprep.subr.mxu0 0.0
    %200 = vmatpush1.xpose.msra.mxu0 0.0
    %201 = vmatprep.subr.mxu0 0.0
    %202 = vmatpush1.xpose.msra.mxu0 0.0
    %203 = vmatprep.subr.mxu0 0.0
    %204 = vmatpush1.xpose.msra.mxu0 0.0
    %205 = vmatprep.subr.mxu0 0.0
    %206 = vmatpush1.xpose.msra.mxu0 0.0
    %207 = vmatprep.subr.mxu0 0.0
    %208 = vmatpush1.xpose.msra.mxu0 0.0
    %209 = vmatprep.subr.mxu0 0.0
    %210 = vmatpush1.xpose.msra.mxu0 0.0
    %211 = vmatprep.subr.mxu0 0.0
    %212 = vmatpush1.xpose.msra.mxu0 0.0
    %213 = vmatprep.subr.mxu0 0.0
    %214 = vmatpush1.xpose.msra.mxu0 0.0
    %215 = vmatprep.subr.mxu0 0.0
    %216 = vmatpush1.xpose.msra.mxu0 0.0
    %217 = vmatprep.subr.mxu0 0.0
    %218 = vmatpush1.xpose.msra.mxu0 0.0
    %219 = vmatprep.mubr.f32.mxu0 0.0
    %220 = vmatmul.mubr.f32.gmra.mrb[0].mxu0 %v80
    %v221 = vpop.f32.mrb[0].mxu0
    %v222 = vadd.f32 0.0, %v221
    %v223 = vpop.f32.mrb[0].mxu0
    %224 = vdwg.mxu0
    %225 = vmatprep.subr.mxu0 0.0
    %226 = vmatpush1.xpose.msra.mxu0 %v80
    %227 = vmatprep.subr.mxu0 0.0
    %228 = vmatpush1.xpose.msra.mxu0 0.0
    %229 = vmatprep.subr.mxu0 0.0
    %230 = vmatpush1.xpose.msra.mxu0 0.0
    %231 = vmatprep.subr.mxu0 0.0
    %232 = vmatpush1.xpose.msra.mxu0 0.0
    %233 = vmatprep.subr.mxu0 0.0
    %234 = vmatpush1.xpose.msra.mxu0 0.0
    %235 = vmatprep.subr.mxu0 0.0
    %236 = vmatpush1.xpose.msra.mxu0 0.0
    %237 = vmatprep.subr.mxu0 0.0
    %238 = vmatpush1.xpose.msra.mxu0 0.0
    %239 = vmatprep.subr.mxu0 0.0
    %240 = vmatpush1.xpose.msra.mxu0 0.0
    %241 = vmatprep.subr.mxu0 0.0
    %242 = vmatpush1.xpose.msra.mxu0 0.0
    %243 = vmatprep.subr.mxu0 0.0
    %244 = vmatpush1.xpose.msra.mxu0 0.0
    %245 = vmatprep.subr.mxu0 0.0
    %246 = vmatpush1.xpose.msra.mxu0 0.0
    %247 = vmatprep.subr.mxu0 0.0
    %248 = vmatpush1.xpose.msra.mxu0 0.0
    %249 = vmatprep.subr.mxu0 0.0
    %250 = vmatpush1.xpose.msra.mxu0 0.0
    %251 = vmatprep.subr.mxu0 0.0
    %252 = vmatpush1.xpose.msra.mxu0 0.0
    %253 = vmatprep.subr.mxu0 0.0
    %254 = vmatpush1.xpose.msra.mxu0 0.0
    %255 = vmatprep.subr.mxu0 0.0
    %256 = vmatpush1.xpose.msra.mxu0 0.0
    %257 = vmatprep.subr.mxu0 0.0
    %258 = vmatpush1.xpose.msra.mxu0 0.0
    %259 = vmatprep.subr.mxu0 0.0
    %260 = vmatpush1.xpose.msra.mxu0 0.0
    %261 = vmatprep.subr.mxu0 0.0
    %262 = vmatpush1.xpose.msra.mxu0 0.0
    %263 = vmatprep.subr.mxu0 0.0
    %264 = vmatpush1.xpose.msra.mxu0 0.0
    %265 = vmatprep.subr.mxu0 0.0
    %266 = vmatpush1.xpose.msra.mxu0 0.0
    %267 = vmatprep.subr.mxu0 0.0
    %268 = vmatpush1.xpose.msra.mxu0 0.0
    %269 = vmatprep.subr.mxu0 0.0
    %270 = vmatpush1.xpose.msra.mxu0 0.0
    %271 = vmatprep.subr.mxu0 0.0
    %272 = vmatpush1.xpose.msra.mxu0 0.0
    %273 = vmatprep.subr.mxu0 0.0
    %274 = vmatpush1.xpose.msra.mxu0 0.0
    %275 = vmatprep.subr.mxu0 0.0
    %276 = vmatpush1.xpose.msra.mxu0 0.0
    %277 = vmatprep.subr.mxu0 0.0
    %278 = vmatpush1.xpose.msra.mxu0 0.0
    %279 = vmatprep.subr.mxu0 0.0
    %280 = vmatpush1.xpose.msra.mxu0 0.0
    %281 = vmatprep.subr.mxu0 0.0
    %282 = vmatpush1.xpose.msra.mxu0 0.0
    %283 = vmatprep.subr.mxu0 0.0
    %284 = vmatpush1.xpose.msra.mxu0 0.0
    %285 = vmatprep.subr.mxu0 0.0
    %286 = vmatpush1.xpose.msra.mxu0 0.0
    %287 = vmatprep.subr.mxu0 0.0
    %288 = vmatpush1.xpose.msra.mxu0 0.0
    %289 = vmatprep.mubr.f32.mxu0 0.0
    %290 = vmatmul.mubr.f32.gmra.mrb[0].mxu0 %v153
    %v291 = vpop.f32.mrb[0].mxu0
    %v292 = vadd.f32 0.0, %v291
    %v293 = vpop.f32.mrb[0].mxu0
    %294 = vdwg.mxu0
    %295 = vmatprep.subr.mxu0 0.0
    %296 = vmatpush1.xpose.msra.mxu0 %v153
    %297 = vmatprep.subr.mxu0 0.0
    %298 = vmatpush1.xpose.msra.mxu0 0.0
    %299 = vmatprep.subr.mxu0 0.0
    %300 = vmatpush1.xpose.msra.mxu0 0.0
    %301 = vmatprep.subr.mxu0 0.0
    %302 = vmatpush1.xpose.msra.mxu0 0.0
    %303 = vmatprep.subr.mxu0 0.0
    %304 = vmatpush1.xpose.msra.mxu0 0.0
    %305 = vmatprep.subr.mxu0 0.0
    %306 = vmatpush1.xpose.msra.mxu0 0.0
    %307 = vmatprep.subr.mxu0 0.0
    %308 = vmatpush1.xpose.msra.mxu0 0.0
    %309 = vmatprep.subr.mxu0 0.0
    %310 = vmatpush1.xpose.msra.mxu0 0.0
    %311 = vmatprep.subr.mxu0 0.0
    %312 = vmatpush1.xpose.msra.mxu0 0.0
    %313 = vmatprep.subr.mxu0 0.0
    %314 = vmatpush1.xpose.msra.mxu0 0.0
    %315 = vmatprep.subr.mxu0 0.0
    %316 = vmatpush1.xpose.msra.mxu0 0.0
    %317 = vmatprep.subr.mxu0 0.0
    %318 = vmatpush1.xpose.msra.mxu0 0.0
    %319 = vmatprep.subr.mxu0 0.0
    %320 = vmatpush1.xpose.msra.mxu0 0.0
    %321 = vmatprep.subr.mxu0 0.0
    %322 = vmatpush1.xpose.msra.mxu0 0.0
    %323 = vmatprep.subr.mxu0 0.0
    %324 = vmatpush1.xpose.msra.mxu0 0.0
    %325 = vmatprep.subr.mxu0 0.0
    %326 = vmatpush1.xpose.msra.mxu0 0.0
    %327 = vmatprep.subr.mxu0 0.0
    %328 = vmatpush1.xpose.msra.mxu0 0.0
    %329 = vmatprep.subr.mxu0 0.0
    %330 = vmatpush1.xpose.msra.mxu0 0.0
    %331 = vmatprep.subr.mxu0 0.0
    %332 = vmatpush1.xpose.msra.mxu0 0.0
    %333 = vmatprep.subr.mxu0 0.0
    %334 = vmatpush1.xpose.msra.mxu0 0.0
    %335 = vmatprep.subr.mxu0 0.0
    %336 = vmatpush1.xpose.msra.mxu0 0.0
    %337 = vmatprep.subr.mxu0 0.0
    %338 = vmatpush1.xpose.msra.mxu0 0.0
    %339 = vmatprep.subr.mxu0 0.0
    %340 = vmatpush1.xpose.msra.mxu0 0.0
    %341 = vmatprep.subr.mxu0 0.0
    %342 = vmatpush1.xpose.msra.mxu0 0.0
    %343 = vmatprep.subr.mxu0 0.0
    %344 = vmatpush1.xpose.msra.mxu0 0.0
    %345 = vmatprep.subr.mxu0 0.0
    %346 = vmatpush1.xpose.msra.mxu0 0.0
    %347 = vmatprep.subr.mxu0 0.0
    %348 = vmatpush1.xpose.msra.mxu0 0.0
    %349 = vmatprep.subr.mxu0 0.0
    %350 = vmatpush1.xpose.msra.mxu0 0.0
    %351 = vmatprep.subr.mxu0 0.0
    %352 = vmatpush1.xpose.msra.mxu0 0.0
    %353 = vmatprep.subr.mxu0 0.0
    %354 = vmatpush1.xpose.msra.mxu0 0.0
    %355 = vmatprep.subr.mxu0 0.0
    %356 = vmatpush1.xpose.msra.mxu0 0.0
    %357 = vmatprep.subr.mxu0 0.0
    %358 = vmatpush1.xpose.msra.mxu0 0.0
    %359 = vmatprep.mubr.f32.mxu0 0.0
    %360 = vmatmul.mubr.f32.gmra.mrb[0].mxu0 %v153
    %v361 = vpop.f32.mrb[0].mxu0
    %v362 = vadd.f32 0.0, %v361
    %v363 = vpop.f32.mrb[0].mxu0
    %364 = vdwg.mxu0
    %v365 = vmul.f32 %v149, 2.0
    %v366 = vmul.f32 %v365, 1.442695
    %v367 = vpow.pop %v366
    %vm368 = vcmask 64512
    %v369 = vsel %vm368, %v367, 0.0
    %370 = vadd.xlane.f32.xlu0 %v369
    %v371 = vpop.xlane.xlu0 %370
    %v372 = vmul.f32 %v222, 2.0
    %v373 = vmul.f32 %v372, 1.442695
    %v374 = vpow.pop %v373
    %v375 = vsel %vm368, %v374, 0.0
    %376 = vadd.xlane.f32.xlu0 %v375
    %v377 = vpop.xlane.xlu0 %376
    %v378 = vadd.f32 %v371, %v377
    %v379 = vmul.f32 %v292, 2.0
    %v380 = vmul.f32 %v379, 1.442695
    %v381 = vpow.pop %v380
    %v382 = vsel %vm368, %v381, 0.0
    %383 = vadd.xlane.f32.xlu0 %v382
    %v384 = vpop.xlane.xlu0 %383
    %v385 = vmul.f32 %v362, 2.0
    %v386 = vmul.f32 %v385, 1.442695
    %v387 = vpow.pop %v386
    %v388 = vsel %vm368, %v387, 0.0
    %389 = vadd.xlane.f32.xlu0 %v388
    %v390 = vpop.xlane.xlu0 %389
    %v391 = vadd.f32 %v384, %v390
    %v392 = vmul.f32 %v70, 2.0
    %v393 = vmul.f32 %v392, 1.442695
    %v394 = vpow.pop %v393
    %v395 = vmul.f32 %v74, 2.0
    %v396 = vmul.f32 %v395, 1.442695
    %v397 = vpow.pop %v396
    %v398 = vsub.f32 %v378, %v397
    %v399 = vsub.f32 %v398, %v394
    %v400 = vmul.f32 %v78, 2.0
    %v401 = vmul.f32 %v400, 1.442695
    %v402 = vpow.pop %v401
    %v403 = vsub.f32 %v391, %v402
    %v404 = vsub.f32 %v403, %v394
    %v405 = vadd.f32 %v394, 1.0
    %v406 = vlog2.pop %v405
    %v407 = vmul.f32 %v406, 0.6931472
    %v408 = vadd.f32 %v399, 1.0
    %v409 = vlog2.pop %v408
    %v410 = vmul.f32 %v409, 0.6931472
    %v411 = vsub.f32 %v410, %v407
    %v412 = vadd.f32 %v411, 0.1
    %v413 = vmax.f32 %v412, 0.0
    %v414 = vadd.f32 %v404, 1.0
    %v415 = vlog2.pop %v414
    %v416 = vmul.f32 %v415, 0.6931472
    %v417 = vsub.f32 %v416, %v407
    %v418 = vadd.f32 %v417, 0.1
    %v419 = vmax.f32 %v418, 0.0
    %vm420 = vcmask 7168
    %v421 = vsel %vm420, %v413, 0.0
    %422 = vadd.xlane.f32.xlu0 %v421
    %v423 = vpop.xlane.xlu0 %422
    %v424 = vrot.slane %v423, 4
    %v425 = vadd.f32 %v423, %v424
    %v426 = vrot.slane %v425, 2
    %v427 = vadd.f32 %v425, %v426
    %v428 = vrot.slane %v427, 1
    %v429 = vadd.f32 %v427, %v428
    %s430 = vtos %v429
    %v431 = vsel %vm420, %v419, 0.0
    %432 = vadd.xlane.f32.xlu0 %v431
    %v433 = vpop.xlane.xlu0 %432
    %v434 = vrot.slane %v433, 4
    %v435 = vadd.f32 %v433, %v434
    %v436 = vrot.slane %v435, 2
    %v437 = vadd.f32 %v435, %v436
    %v438 = vrot.slane %v437, 1
    %v439 = vadd.f32 %v437, %v438
    %s440 = vtos %v439
    %s441 = sadd.f32 %s430, %s440
    %v442 = vrcp.pop 16.0
    %s443 = vtos %v442
    %s444 = smul.f32 %s441, %s443
    %s445 = scalar_lea.smem [#allocation7], 0
    %446 = sst [smem:[%s445]] %s444
    // Predicated region
    $region18: #{tpu_custom_call.1} parent=1 // pred_check
      _
    $region19: #{tpu_custom_call.1} parent=1 // pred_check_branch
      %448 = sbr.rel (0) target = $region21
    $region20: #{tpu_custom_call.1} parent=1 // pred_region
      %s450 = ssub.s32 16, 16
      %451 = vsyncadd [#allocation4], %s450
      %454 = dma.smem_to_hbm [#allocation7], 16, %s2, [#allocation4]
    $region21: #{tpu_custom_call.1} parent=1 // pred_fallthru
      _
    // Predicated region
    $region22: #{tpu_custom_call.1} parent=1 // pred_check
      _
    $region23: #{tpu_custom_call.1} parent=1 // pred_check_branch
      %456 = sbr.rel (0) target = $region25
    $region24: #{tpu_custom_call.1} parent=1 // pred_region
      %457 = dma.done [#allocation4], 16
    $region25: #{tpu_custom_call.1} parent=1 // pred_fallthru
      _
    %458 = sfence
    %459 = vsyncpa [#allocation3], 1
    %460 = vsyncpa [#allocation6], 1
    %461 = vsyncpa [#allocation4], 1

</llo_original>
